<compile_context>
chip_gen: v7x
topology: tpu7x:2x2x1
jax: 0.10.0
libtpu: 0.0.40
codegen_flags: <defaults>
</compile_context>

<pallas_src>
import functools

import jax
import jax.numpy as jnp
from jax import lax
from jax.experimental import pallas as pl
from jax.experimental.pallas import tpu as pltpu

HIDDEN = 64  # hidden width of the PyTorch module (layer1/layer2 out_features)


def _round_up(n, m):
    return ((n + m - 1) // m) * m


def mlp_kernel(x_ref, w1_ref, b1_ref, w2_ref, b2_ref, w3_ref, b3_ref, o_ref):
    """Fused Linear->ReLU->Linear->ReLU->Linear, computed transposed.

    Batch lives on the lane axis of every intermediate and of the output, so the
    output store is lane-dense on useful data.  Weights are in PyTorch (out, in)
    layout; biases are (out, 1) columns broadcast along lanes.  All dots
    accumulate in f32 regardless of operand dtype.
    """
    x = x_ref[...].astype(w1_ref.dtype)                    # (block_b, in)
    # h1^T = W1 @ x^T : contract the last dim of both operands -> (HIDDEN, block_b)
    h1 = lax.dot_general(w1_ref[...], x,
                         dimension_numbers=(((1,), (1,)), ((), ())),
                         preferred_element_type=jnp.float32)
    h1 = jnp.maximum(h1 + b1_ref[...], 0.0)
    # h2^T = W2 @ h1^T -> (HIDDEN, block_b)
    h2 = jnp.dot(w2_ref[...], h1.astype(w2_ref.dtype),
                 preferred_element_type=jnp.float32)
    h2 = jnp.maximum(h2 + b2_ref[...], 0.0)
    # out^T = W3 @ h2^T -> (out_pad, block_b)
    out = jnp.dot(w3_ref[...], h2.astype(w3_ref.dtype),
                  preferred_element_type=jnp.float32)
    o_ref[...] = (out + b3_ref[...]).astype(o_ref.dtype)


def _choose_block_b(batch, requested):
    """Batch tile: multiple of 128 (lane dim of the output tile), <= requested,
    and small enough that the grid has >= 2 steps whenever the batch allows it
    (megacore sharding on v7x + DMA/compute overlap)."""
    requested = max(128, min(int(requested), 1024))
    bb = (requested // 128) * 128
    b128 = _round_up(batch, 128)
    if b128 >= 256:
        bb = min(bb, max(128, (b128 // 2 // 128) * 128))
    else:
        bb = 128
    return bb


def mlp_forward_t(x, kparams, block_b=512):
    """Fused MLP forward. Returns the *transposed, padded* output
    (out_pad, B_pad) — callers that can consume this slab directly (e.g. a
    following fused op) should use it and skip the transpose-back below."""
    w1k, b1k, w2k, b2k, w3k, b3k = kparams
    B, input_dim = x.shape
    hidden = w1k.shape[0]
    out_pad = w3k.shape[0]

    bb = _choose_block_b(B, block_b)
    B_pad = _round_up(B, bb)
    if B_pad != B:
        x = jnp.pad(x, ((0, B_pad - B), (0, 0)))

    out_dtype = jnp.bfloat16 if w1k.dtype == jnp.bfloat16 else jnp.float32
    grid = (B_pad // bb,)

    in_specs = [
        pl.BlockSpec((bb, input_dim), lambda i: (i, 0)),        # x tile (natural layout)
        pl.BlockSpec((hidden, input_dim), lambda i: (0, 0)),    # W1 (resident)
        pl.BlockSpec((hidden, 1), lambda i: (0, 0)),            # b1
        pl.BlockSpec((hidden, hidden), lambda i: (0, 0)),       # W2
        pl.BlockSpec((hidden, 1), lambda i: (0, 0)),            # b2
        pl.BlockSpec((out_pad, hidden), lambda i: (0, 0)),      # W3
        pl.BlockSpec((out_pad, 1), lambda i: (0, 0)),           # b3
    ]
    out_specs = pl.BlockSpec((out_pad, bb), lambda i: (0, i))

    return pl.pallas_call(
        mlp_kernel,
        out_shape=jax.ShapeDtypeStruct((out_pad, B_pad), out_dtype),
        grid=grid,
        in_specs=in_specs,
        out_specs=out_specs,
        compiler_params=pltpu.CompilerParams(
            dimension_semantics=("parallel",),
            # VMEM usage is < 1 MiB per step; default scoped VMEM suffices on
            # v5e / v6e / v7x, so no explicit vmem_limit_bytes.
        ),
    )(x, w1k, b1k, w2k, b2k, w3k, b3k)


@functools.partial(jax.jit, static_argnames=("output_dim", "block_b"))
def mlp_forward(x, kparams, output_dim, block_b=512):
    """Drop-in forward matching the PyTorch module: (B, in) f32 -> (B, out)."""
    out_t = mlp_forward_t(x, kparams, block_b=block_b)
    return out_t[:output_dim, :x.shape[0]].T


# ---------------- parameter helpers (PyTorch layout: W (out,in), b (out,)) ----


def init_linear(key, fan_in, fan_out):
    """PyTorch nn.Linear-style uniform(+-1/sqrt(fan_in)) init."""
    kw, kb = jax.random.split(key)
    bound = 1.0 / jnp.sqrt(jnp.float32(fan_in))
    w = jax.random.uniform(kw, (fan_out, fan_in), jnp.float32, -bound, bound)
    b = jax.random.uniform(kb, (fan_out,), jnp.float32, -bound, bound)
    return w, b


def init_mlp_params(key, input_dim, output_dim):
    k1, k2, k3 = jax.random.split(key, 3)
    w1, b1 = init_linear(k1, input_dim, HIDDEN)
    w2, b2 = init_linear(k2, HIDDEN, HIDDEN)
    w3, b3 = init_linear(k3, HIDDEN, output_dim)
    return (w1, b1, w2, b2, w3, b3)


def prepare_mlp_params(params, use_bf16=False):
    """One-time conversion (hoisted out of the per-call path) into the kernel
    layout: optional bf16 weight cast, zero-pad of the output rows to the
    sublane multiple (exact: zero rows/biases contribute nothing), biases as
    (out, 1) f32 columns."""
    w1, b1, w2, b2, w3, b3 = params
    output_dim = w3.shape[0]
    sub = 16 if use_bf16 else 8
    out_pad = _round_up(output_dim, sub)
    wdt = jnp.bfloat16 if use_bf16 else jnp.float32
    w3p = jnp.pad(w3, ((0, out_pad - output_dim), (0, 0)))
    b3p = jnp.pad(b3, ((0, out_pad - output_dim),))
    return (w1.astype(wdt), b1.reshape(-1, 1).astype(jnp.float32),
            w2.astype(wdt), b2.reshape(-1, 1).astype(jnp.float32),
            w3p.astype(wdt), b3p.reshape(-1, 1).astype(jnp.float32))


def mlp_reference(x, params):
    """Pure-JAX reference (mirrors the PyTorch forward)."""
    w1, b1, w2, b2, w3, b3 = params
    h = jnp.maximum(x @ w1.T + b1, 0.0)
    h = jnp.maximum(h @ w2.T + b2, 0.0)
    return h @ w3.T + b3


if __name__ == "__main__":
    key = jax.random.PRNGKey(0)
    k_x, k_p = jax.random.split(key)

    batch = 256        # not a special multiple of the tile; wrapper handles padding
    input_dim = 16
    output_dim = 4

    x = jax.random.normal(k_x, (batch, input_dim), jnp.float32)
    params = init_mlp_params(k_p, input_dim, output_dim)
    ref = mlp_reference(x, params)

    # ---- f32 path (strict parity). block_b auto-clamps to 128 -> grid of 2. ----
    kparams_f32 = prepare_mlp_params(params, use_bf16=False)
    out = jax.block_until_ready(
        mlp_forward(x, kparams_f32, output_dim=output_dim, block_b=512))
    assert out.shape == (batch, output_dim)
    assert jnp.allclose(out, ref, atol=1e-5, rtol=1e-5), "mismatch vs reference (f32)"

    # ---- bf16-weight path: bf16 MXU + bf16 output store, f32 accumulation. ----
    kparams_bf16 = prepare_mlp_params(params, use_bf16=True)
    out_bf16 = jax.block_until_ready(
        mlp_forward(x, kparams_bf16, output_dim=output_dim, block_b=512))
    assert out_bf16.shape == (batch, output_dim)
    assert out_bf16.dtype == jnp.bfloat16
    assert jnp.allclose(out_bf16.astype(jnp.float32), ref, atol=5e-2, rtol=5e-2), \
        "mismatch vs reference (bf16)"

    print("KERNEL_OK")
</pallas_src>

<mosaic_0001>
module attributes {stable_mosaic.version = 11 : i64} {
  func.func @mlp_kernel(%arg0: i32, %arg1: memref<128x16xf32, #tpu.memory_space<vmem>>, %arg2: memref<64x16xf32, #tpu.memory_space<vmem>>, %arg3: memref<64x1xf32, #tpu.memory_space<vmem>>, %arg4: memref<64x64xf32, #tpu.memory_space<vmem>>, %arg5: memref<64x1xf32, #tpu.memory_space<vmem>>, %arg6: memref<8x64xf32, #tpu.memory_space<vmem>>, %arg7: memref<8x1xf32, #tpu.memory_space<vmem>>, %arg8: memref<8x128xf32, #tpu.memory_space<vmem>>) attributes {dimension_semantics = [#tpu.dimension_semantics<parallel>], iteration_bounds = array<i64: 2>, scalar_prefetch = 0 : i64, scratch_operands = 0 : i64, tpu.core_type = #tpu.core_type<tc>, window_params = [{transform_indices = @transform_0, window_bounds = array<i64: 128, 16>}, {pipeline_mode = #tpu.pipeline_mode<synchronous>, transform_indices = @transform_1, window_bounds = array<i64: 64, 16>}, {pipeline_mode = #tpu.pipeline_mode<synchronous>, transform_indices = @transform_2, window_bounds = array<i64: 64, 1>}, {pipeline_mode = #tpu.pipeline_mode<synchronous>, transform_indices = @transform_3, window_bounds = array<i64: 64, 64>}, {pipeline_mode = #tpu.pipeline_mode<synchronous>, transform_indices = @transform_4, window_bounds = array<i64: 64, 1>}, {pipeline_mode = #tpu.pipeline_mode<synchronous>, transform_indices = @transform_5, window_bounds = array<i64: 8, 64>}, {pipeline_mode = #tpu.pipeline_mode<synchronous>, transform_indices = @transform_6, window_bounds = array<i64: 8, 1>}, {transform_indices = @transform_7, window_bounds = array<i64: 8, 128>}]} {
    %c0 = arith.constant 0 : index
    %c0_0 = arith.constant 0 : index
    %0 = vector.load %arg1[%c0, %c0_0] : memref<128x16xf32, #tpu.memory_space<vmem>>, vector<128x16xf32>
    %c0_1 = arith.constant 0 : index
    %c0_2 = arith.constant 0 : index
    %1 = vector.load %arg2[%c0_1, %c0_2] : memref<64x16xf32, #tpu.memory_space<vmem>>, vector<64x16xf32>
    %cst = arith.constant dense<0.000000e+00> : vector<64x128xf32>
    %2 = tpu.matmul %1, %0, %cst {dimension_numbers = #tpu.dot_dimension_numbers<[1], [1], [0], [0], [0, 0, 1, 0], [], []>} : vector<64x16xf32>, vector<128x16xf32>, vector<64x128xf32> -> vector<64x128xf32>
    %c0_3 = arith.constant 0 : index
    %c0_4 = arith.constant 0 : index
    %3 = vector.load %arg3[%c0_3, %c0_4] : memref<64x1xf32, #tpu.memory_space<vmem>>, vector<64x1xf32>
    %4 = vector.broadcast %3 : vector<64x1xf32> to vector<64x128xf32>
    %5 = arith.addf %2, %4 : vector<64x128xf32>
    %cst_5 = arith.constant 0.000000e+00 : f32
    %6 = vector.broadcast %cst_5 : f32 to vector<64x128xf32>
    %7 = arith.maximumf %5, %6 : vector<64x128xf32>
    %c0_6 = arith.constant 0 : index
    %c0_7 = arith.constant 0 : index
    %8 = vector.load %arg4[%c0_6, %c0_7] : memref<64x64xf32, #tpu.memory_space<vmem>>, vector<64x64xf32>
    %cst_8 = arith.constant dense<0.000000e+00> : vector<64x128xf32>
    %9 = tpu.matmul %8, %7, %cst_8 {dimension_numbers = #tpu.dot_dimension_numbers<[1], [0], [0], [1], [0, 0, 1, 1], [], []>} : vector<64x64xf32>, vector<64x128xf32>, vector<64x128xf32> -> vector<64x128xf32>
    %c0_9 = arith.constant 0 : index
    %c0_10 = arith.constant 0 : index
    %10 = vector.load %arg5[%c0_9, %c0_10] : memref<64x1xf32, #tpu.memory_space<vmem>>, vector<64x1xf32>
    %11 = vector.broadcast %10 : vector<64x1xf32> to vector<64x128xf32>
    %12 = arith.addf %9, %11 : vector<64x128xf32>
    %cst_11 = arith.constant 0.000000e+00 : f32
    %13 = vector.broadcast %cst_11 : f32 to vector<64x128xf32>
    %14 = arith.maximumf %12, %13 : vector<64x128xf32>
    %c0_12 = arith.constant 0 : index
    %c0_13 = arith.constant 0 : index
    %15 = vector.load %arg6[%c0_12, %c0_13] : memref<8x64xf32, #tpu.memory_space<vmem>>, vector<8x64xf32>
    %cst_14 = arith.constant dense<0.000000e+00> : vector<8x128xf32>
    %16 = tpu.matmul %15, %14, %cst_14 {dimension_numbers = #tpu.dot_dimension_numbers<[1], [0], [0], [1], [0, 0, 1, 1], [], []>} : vector<8x64xf32>, vector<64x128xf32>, vector<8x128xf32> -> vector<8x128xf32>
    %c0_15 = arith.constant 0 : index
    %c0_16 = arith.constant 0 : index
    %17 = vector.load %arg7[%c0_15, %c0_16] : memref<8x1xf32, #tpu.memory_space<vmem>>, vector<8x1xf32>
    %18 = vector.broadcast %17 : vector<8x1xf32> to vector<8x128xf32>
    %19 = arith.addf %16, %18 : vector<8x128xf32>
    %c0_17 = arith.constant 0 : index
    %c0_18 = arith.constant 0 : index
    %20 = vector.load %arg8[%c0_17, %c0_18] : memref<8x128xf32, #tpu.memory_space<vmem>>, vector<8x128xf32>
    tpu.vector_store %arg8[%c0_17, %c0_18], %19 {strides = array<i32>} : memref<8x128xf32, #tpu.memory_space<vmem>>, vector<8x128xf32>,
    return
  }
  func.func @transform_0(%arg0: i32) -> (i32, i32) {
    %c0_i32 = arith.constant 0 : i32
    %c0_i32_0 = arith.constant 0 : i32
    return %arg0, %c0_i32 : i32, i32
  }
  func.func @transform_1(%arg0: i32) -> (i32, i32) {
    %c0_i32 = arith.constant 0 : i32
    %c0_i32_0 = arith.constant 0 : i32
    %c0_i32_1 = arith.constant 0 : i32
    return %c0_i32, %c0_i32_0 : i32, i32
  }
  func.func @transform_2(%arg0: i32) -> (i32, i32) {
    %c0_i32 = arith.constant 0 : i32
    %c0_i32_0 = arith.constant 0 : i32
    %c0_i32_1 = arith.constant 0 : i32
    return %c0_i32, %c0_i32_0 : i32, i32
  }
  func.func @transform_3(%arg0: i32) -> (i32, i32) {
    %c0_i32 = arith.constant 0 : i32
    %c0_i32_0 = arith.constant 0 : i32
    %c0_i32_1 = arith.constant 0 : i32
    return %c0_i32, %c0_i32_0 : i32, i32
  }
  func.func @transform_4(%arg0: i32) -> (i32, i32) {
    %c0_i32 = arith.constant 0 : i32
    %c0_i32_0 = arith.constant 0 : i32
    %c0_i32_1 = arith.constant 0 : i32
    return %c0_i32, %c0_i32_0 : i32, i32
  }
  func.func @transform_5(%arg0: i32) -> (i32, i32) {
    %c0_i32 = arith.constant 0 : i32
    %c0_i32_0 = arith.constant 0 : i32
    %c0_i32_1 = arith.constant 0 : i32
    return %c0_i32, %c0_i32_0 : i32, i32
  }
  func.func @transform_6(%arg0: i32) -> (i32, i32) {
    %c0_i32 = arith.constant 0 : i32
    %c0_i32_0 = arith.constant 0 : i32
    %c0_i32_1 = arith.constant 0 : i32
    return %c0_i32, %c0_i32_0 : i32, i32
  }
  func.func @transform_7(%arg0: i32) -> (i32, i32) {
    %c0_i32 = arith.constant 0 : i32
    %c0_i32_0 = arith.constant 0 : i32
    return %c0_i32, %arg0 : i32, i32
  }
}

</mosaic_0001>

<llo_original>
// kernel: mlp_forward.1
$region0: #{mlp_forward.1}
  #allocation0 [shape = 'u32[]', space=smem, size = 0x4, offset = 0x4, fixed_abs, tag = 'smem constant byte address 0x4 - core index']
  #allocation1 [shape = 'u32[144,128]{1,0:T(1,128)}', space=vmem, size = 0x12000, scoped, tag = 'internal scratch']
  %s0 = inlined_call_operand.vmem [shape: f32[256,16], index: 0, kind: input, shape index: {}]
  %s1 = inlined_call_operand.vmem [shape: f32[64,16], index: 1, kind: input, shape index: {}]
  %s2 = inlined_call_operand.vmem [shape: f32[64,1], index: 2, kind: input, shape index: {}]
  %s3 = inlined_call_operand.vmem [shape: f32[64,64], index: 3, kind: input, shape index: {}]
  %s4 = inlined_call_operand.vmem [shape: f32[64,1], index: 4, kind: input, shape index: {}]
  %s5 = inlined_call_operand.vmem [shape: f32[8,64], index: 5, kind: input, shape index: {}]
  %s6 = inlined_call_operand.vmem [shape: f32[8,1], index: 6, kind: input, shape index: {}]
  %s7 = inlined_call_operand.vmem [shape: f32[8,256], index: 7, kind: output, shape index: {}]
  %s8 = sld [smem:[#allocation0]]
  $region61: #{mlp_forward.1} parent=0
    _
  %s10 = ssub.s32 1, %s8
  %s11 = scalar_select 0, %s10, %s8
  loop: start=0, step=1, limit=4
  $region2: #{mlp_forward.1} parent=0 // loop_pre_header
    _
  $region3: #{mlp_forward.1} parent=0 // loop_header
    %s13 = sphi 0, %s17
    %p14 = scmp.ge.s32.totalorder %s13, 4
    %s23 = sphi 0, %s25
    %s26 = sphi 0, %s23
    %s27 = sphi 0, %s26
    %s43 = sphi 0, %s27
    %s47 = sphi 0, %s47
    %s49 = sphi 0, %s47
    %s50 = sphi 0, %s49
    %s64 = sphi 0, %s50
    %s68 = sphi 0, %s68
    %s70 = sphi 0, %s68
    %s71 = sphi 0, %s70
    %s85 = sphi 0, %s71
    %s89 = sphi 0, %s89
    %s91 = sphi 0, %s89
    %s92 = sphi 0, %s91
    %s106 = sphi 0, %s92
    %s110 = sphi 0, %s110
    %s112 = sphi 0, %s110
    %s113 = sphi 0, %s112
    %s127 = sphi 0, %s113
    %s131 = sphi 0, %s131
    %s133 = sphi 0, %s131
    %s134 = sphi 0, %s133
    %s148 = sphi 0, %s134
    %s152 = sphi 0, %s152
    %s154 = sphi 0, %s152
    %s155 = sphi 0, %s154
    %s169 = sphi 0, %s155
    %s175 = sphi 0, %s177
    %s178 = sphi 0, %s175
    %s179 = sphi 0, %s178
    %s195 = sphi 0, %s179
  $region4: #{mlp_forward.1} parent=0 // loop_header_branch
    %16 = sbr.rel (%p14) target = $region8
  $region5: #{mlp_forward.1} parent=0 // loop_body
    %s18 = ssub.s32 %s13, 1
    %s19 = ssub.s32 %s13, 2
    %s20 = sadd.s32 %s13, 1
    %s21 = ssub.s32 %s13, %s20
    %p22 = scmp.eq.s32.totalorder %s21, 0
    %s24 = sadd.s32 %s23, 1
    %s25 = scalar_select %p22, %s23, %s24
    %p28 = pneg %p22
    %p29 = scmp.eq.s32.totalorder %s13, 1
    %p30 = por %p28, %p29
    %p31 = scmp.ne.s32.totalorder %s23, %s26
    %p32 = scmp.eq.s32.totalorder %s13, 0
    %p33 = por %p31, %p32
    %p34 = scmp.ne.s32.totalorder %s23, %s26
    %p35 = scmp.eq.s32.totalorder %s18, 1
    %p36 = por %p34, %p35
    %p37 = scmp.ne.s32.totalorder %s26, %s27
    %p38 = scmp.eq.s32.totalorder %s18, 0
    %p39 = por %p37, %p38
    %p40 = scmp.ne.s32.totalorder %s26, %s27
    %p41 = scmp.eq.s32.totalorder %s19, 1
    %p42 = por %p40, %p41
    %p44 = scmp.ne.s32.totalorder %s27, %s43
    %p45 = scmp.eq.s32.totalorder %s19, 0
    %p46 = por %p44, %p45
    %s48 = sadd.s32 %s47, 1
    %p51 = scmp.eq.s32.totalorder %s13, 1
    %p52 = scmp.ne.s32.totalorder %s47, %s49
    %p53 = scmp.eq.s32.totalorder %s13, 0
    %p54 = por %p52, %p53
    %p55 = scmp.ne.s32.totalorder %s47, %s49
    %p56 = scmp.eq.s32.totalorder %s18, 1
    %p57 = por %p55, %p56
    %p58 = scmp.ne.s32.totalorder %s49, %s50
    %p59 = scmp.eq.s32.totalorder %s18, 0
    %p60 = por %p58, %p59
    %p61 = scmp.ne.s32.totalorder %s49, %s50
    %p62 = scmp.eq.s32.totalorder %s19, 1
    %p63 = por %p61, %p62
    %p65 = scmp.ne.s32.totalorder %s50, %s64
    %p66 = scmp.eq.s32.totalorder %s19, 0
    %p67 = por %p65, %p66
    %s69 = sadd.s32 %s68, 1
    %p72 = scmp.eq.s32.totalorder %s13, 1
    %p73 = scmp.ne.s32.totalorder %s68, %s70
    %p74 = scmp.eq.s32.totalorder %s13, 0
    %p75 = por %p73, %p74
    %p76 = scmp.ne.s32.totalorder %s68, %s70
    %p77 = scmp.eq.s32.totalorder %s18, 1
    %p78 = por %p76, %p77
    %p79 = scmp.ne.s32.totalorder %s70, %s71
    %p80 = scmp.eq.s32.totalorder %s18, 0
    %p81 = por %p79, %p80
    %p82 = scmp.ne.s32.totalorder %s70, %s71
    %p83 = scmp.eq.s32.totalorder %s19, 1
    %p84 = por %p82, %p83
    %p86 = scmp.ne.s32.totalorder %s71, %s85
    %p87 = scmp.eq.s32.totalorder %s19, 0
    %p88 = por %p86, %p87
    %s90 = sadd.s32 %s89, 1
    %p93 = scmp.eq.s32.totalorder %s13, 1
    %p94 = scmp.ne.s32.totalorder %s89, %s91
    %p95 = scmp.eq.s32.totalorder %s13, 0
    %p96 = por %p94, %p95
    %p97 = scmp.ne.s32.totalorder %s89, %s91
    %p98 = scmp.eq.s32.totalorder %s18, 1
    %p99 = por %p97, %p98
    %p100 = scmp.ne.s32.totalorder %s91, %s92
    %p101 = scmp.eq.s32.totalorder %s18, 0
    %p102 = por %p100, %p101
    %p103 = scmp.ne.s32.totalorder %s91, %s92
    %p104 = scmp.eq.s32.totalorder %s19, 1
    %p105 = por %p103, %p104
    %p107 = scmp.ne.s32.totalorder %s92, %s106
    %p108 = scmp.eq.s32.totalorder %s19, 0
    %p109 = por %p107, %p108
    %s111 = sadd.s32 %s110, 1
    %p114 = scmp.eq.s32.totalorder %s13, 1
    %p115 = scmp.ne.s32.totalorder %s110, %s112
    %p116 = scmp.eq.s32.totalorder %s13, 0
    %p117 = por %p115, %p116
    %p118 = scmp.ne.s32.totalorder %s110, %s112
    %p119 = scmp.eq.s32.totalorder %s18, 1
    %p120 = por %p118, %p119
    %p121 = scmp.ne.s32.totalorder %s112, %s113
    %p122 = scmp.eq.s32.totalorder %s18, 0
    %p123 = por %p121, %p122
    %p124 = scmp.ne.s32.totalorder %s112, %s113
    %p125 = scmp.eq.s32.totalorder %s19, 1
    %p126 = por %p124, %p125
    %p128 = scmp.ne.s32.totalorder %s113, %s127
    %p129 = scmp.eq.s32.totalorder %s19, 0
    %p130 = por %p128, %p129
    %s132 = sadd.s32 %s131, 1
    %p135 = scmp.eq.s32.totalorder %s13, 1
    %p136 = scmp.ne.s32.totalorder %s131, %s133
    %p137 = scmp.eq.s32.totalorder %s13, 0
    %p138 = por %p136, %p137
    %p139 = scmp.ne.s32.totalorder %s131, %s133
    %p140 = scmp.eq.s32.totalorder %s18, 1
    %p141 = por %p139, %p140
    %p142 = scmp.ne.s32.totalorder %s133, %s134
    %p143 = scmp.eq.s32.totalorder %s18, 0
    %p144 = por %p142, %p143
    %p145 = scmp.ne.s32.totalorder %s133, %s134
    %p146 = scmp.eq.s32.totalorder %s19, 1
    %p147 = por %p145, %p146
    %p149 = scmp.ne.s32.totalorder %s134, %s148
    %p150 = scmp.eq.s32.totalorder %s19, 0
    %p151 = por %p149, %p150
    %s153 = sadd.s32 %s152, 1
    %p156 = scmp.eq.s32.totalorder %s13, 1
    %p157 = scmp.ne.s32.totalorder %s152, %s154
    %p158 = scmp.eq.s32.totalorder %s13, 0
    %p159 = por %p157, %p158
    %p160 = scmp.ne.s32.totalorder %s152, %s154
    %p161 = scmp.eq.s32.totalorder %s18, 1
    %p162 = por %p160, %p161
    %p163 = scmp.ne.s32.totalorder %s154, %s155
    %p164 = scmp.eq.s32.totalorder %s18, 0
    %p165 = por %p163, %p164
    %p166 = scmp.ne.s32.totalorder %s154, %s155
    %p167 = scmp.eq.s32.totalorder %s19, 1
    %p168 = por %p166, %p167
    %p170 = scmp.ne.s32.totalorder %s155, %s169
    %p171 = scmp.eq.s32.totalorder %s19, 0
    %p172 = por %p170, %p171
    %s173 = ssub.s32 %s13, %s20
    %p174 = scmp.eq.s32.totalorder %s173, 0
    %s176 = sadd.s32 %s175, 1
    %s177 = scalar_select %p174, %s175, %s176
    %p180 = pneg %p174
    %p181 = scmp.eq.s32.totalorder %s13, 1
    %p182 = por %p180, %p181
    %p183 = scmp.ne.s32.totalorder %s175, %s178
    %p184 = scmp.eq.s32.totalorder %s13, 0
    %p185 = por %p183, %p184
    %p186 = scmp.ne.s32.totalorder %s175, %s178
    %p187 = scmp.eq.s32.totalorder %s18, 1
    %p188 = por %p186, %p187
    %p189 = scmp.ne.s32.totalorder %s178, %s179
    %p190 = scmp.eq.s32.totalorder %s18, 0
    %p191 = por %p189, %p190
    %p192 = scmp.ne.s32.totalorder %s178, %s179
    %p193 = scmp.eq.s32.totalorder %s19, 1
    %p194 = por %p192, %p193
    %p196 = scmp.ne.s32.totalorder %s179, %s195
    %p197 = scmp.eq.s32.totalorder %s19, 0
    %p198 = por %p196, %p197
    %p199 = scmp.le.s32.totalorder 1, %s13
    %p200 = scmp.lt.s32.totalorder %s13, 3
    %p201 = pnand %p199, %p200
    %p202 = pneg %p201
    // Predicated region
    $region9: #{mlp_forward.1} parent=5 // pred_check
      _
    $region10: #{mlp_forward.1} parent=5 // pred_check_branch
      %204 = sbr.rel (%p201) target = $region12
    $region11: #{mlp_forward.1} parent=5 // pred_region
      %s205 = ssub.s32 %s13, 1
      // Predicated region
      $region13: #{mlp_forward.1} parent=11 // pred_check
        %p206 = pneg %p60
      $region14: #{mlp_forward.1} parent=11 // pred_check_branch
        %208 = sbr.rel (%p206) target = $region16
      $region15: #{mlp_forward.1} parent=11 // pred_region
        _
      $region16: #{mlp_forward.1} parent=11 // pred_fallthru
        _
      // Predicated region
      $region17: #{mlp_forward.1} parent=11 // pred_check
        %p209 = pneg %p81
      $region18: #{mlp_forward.1} parent=11 // pred_check_branch
        %211 = sbr.rel (%p209) target = $region20
      $region19: #{mlp_forward.1} parent=11 // pred_region
        _
      $region20: #{mlp_forward.1} parent=11 // pred_fallthru
        _
      // Predicated region
      $region21: #{mlp_forward.1} parent=11 // pred_check
        %p212 = pneg %p102
      $region22: #{mlp_forward.1} parent=11 // pred_check_branch
        %214 = sbr.rel (%p212) target = $region24
      $region23: #{mlp_forward.1} parent=11 // pred_region
        _
      $region24: #{mlp_forward.1} parent=11 // pred_fallthru
        _
      // Predicated region
      $region25: #{mlp_forward.1} parent=11 // pred_check
        %p215 = pneg %p123
      $region26: #{mlp_forward.1} parent=11 // pred_check_branch
        %217 = sbr.rel (%p215) target = $region28
      $region27: #{mlp_forward.1} parent=11 // pred_region
        _
      $region28: #{mlp_forward.1} parent=11 // pred_fallthru
        _
      // Predicated region
      $region29: #{mlp_forward.1} parent=11 // pred_check
        %p218 = pneg %p144
      $region30: #{mlp_forward.1} parent=11 // pred_check_branch
        %220 = sbr.rel (%p218) target = $region32
      $region31: #{mlp_forward.1} parent=11 // pred_region
        _
      $region32: #{mlp_forward.1} parent=11 // pred_fallthru
        _
      // Predicated region
      $region33: #{mlp_forward.1} parent=11 // pred_check
        %p221 = pneg %p165
      $region34: #{mlp_forward.1} parent=11 // pred_check_branch
        %223 = sbr.rel (%p221) target = $region36
      $region35: #{mlp_forward.1} parent=11 // pred_region
        _
      $region36: #{mlp_forward.1} parent=11 // pred_fallthru
        _
    $region12: #{mlp_forward.1} parent=5 // pred_fallthru
      _
    %p224 = scmp.lt.s32.totalorder %s13, 2
    // Predicated region
    $region37: #{mlp_forward.1} parent=5 // pred_check
      %p225 = pneg %p224
    $region38: #{mlp_forward.1} parent=5 // pred_check_branch
      %227 = sbr.rel (%p225) target = $region40
    $region39: #{mlp_forward.1} parent=5 // pred_region
      // Predicated region
      $region41: #{mlp_forward.1} parent=39 // pred_check
        %p228 = pneg %p33
      $region42: #{mlp_forward.1} parent=39 // pred_check_branch
        %230 = sbr.rel (%p228) target = $region44
      $region43: #{mlp_forward.1} parent=39 // pred_region
        %s231 = smul.u32 16, %s13
        %p232 = scmp.lt.s32.totalorder %s231, 31
        %s233 = scalar_select %p232, %s231, 31
        %s234 = smul.addr %s233, 8
        %s235 = scalar_lea.vmem %s0, %s234
        %s236 = smul.u32 16, %s13
      $region44: #{mlp_forward.1} parent=39 // pred_fallthru
        _
    $region40: #{mlp_forward.1} parent=5 // pred_fallthru
      _
    %p237 = scmp.le.s32.totalorder 1, %s13
    %p238 = scmp.lt.s32.totalorder %s13, 3
    %p239 = pnand %p237, %p238
    %p240 = pneg %p239
    // Predicated region
    $region45: #{mlp_forward.1} parent=5 // pred_check
      _
    $region46: #{mlp_forward.1} parent=5 // pred_check_branch
      %242 = sbr.rel (%p239) target = $region48
    $region47: #{mlp_forward.1} parent=5 // pred_region
      %s243 = ssub.s32 %s13, 1
      %s244 = smul.u32 16, %s18
      %p245 = scmp.lt.s32.totalorder %s244, 31
      %s246 = scalar_select %p245, %s244, 31
      %s247 = smul.addr %s246, 8
      %s248 = scalar_lea.vmem %s0, %s247
      %p249 = pneg %p39
      %p250 = pneg %p36
      %p251 = pneg %p60
      %p252 = pneg %p57
      %p253 = pneg %p81
      %p254 = pneg %p78
      %p255 = pneg %p102
      %p256 = pneg %p99
      %p257 = pneg %p123
      %p258 = pneg %p120
      %p259 = pneg %p144
      %p260 = pneg %p141
      %p261 = pneg %p165
      %p262 = pneg %p162
      %p263 = pneg %p191
      %p264 = pneg %p188
      %p265 = scmp.lt.s32.totalorder %s18, 1
      %s266 = scalar_select %p265, %s18, 1
      %s267 = smul.addr %s266, 8
      %s268 = scalar_lea.vmem %s7, %s267
      %s269 = smul.u32 16, %s18
      %p270 = scmp.lt.s32.totalorder %s269, 31
      %s271 = scalar_select %p270, %s269, 31
      %s272 = smul.addr %s271, 8
      %s273 = scalar_lea.vmem %s0, %s272
      %s274 = smul.u32 16, %s18
      %p275 = scmp.lt.s32.totalorder %s18, 1
      %s276 = scalar_select %p275, %s18, 1
      %s277 = smul.addr %s276, 8
      %s278 = scalar_lea.vmem %s7, %s277
      %v279 = vld [vmem:[%s273] sm:$0xff]
      %v280 = vld [vmem:[%s273 + $0x8] sm:$0xff]
      %v281 = vld [vmem:[%s273 + $0x10] sm:$0xff]
      %v282 = vld [vmem:[%s273 + $0x18] sm:$0xff]
      %v283 = vld [vmem:[%s273 + $0x20] sm:$0xff]
      %v284 = vld [vmem:[%s273 + $0x28] sm:$0xff]
      %v285 = vld [vmem:[%s273 + $0x30] sm:$0xff]
      %v286 = vld [vmem:[%s273 + $0x38] sm:$0xff]
      %v287 = vld [vmem:[%s273 + $0x40] sm:$0xff]
      %v288 = vld [vmem:[%s273 + $0x48] sm:$0xff]
      %v289 = vld [vmem:[%s273 + $0x50] sm:$0xff]
      %v290 = vld [vmem:[%s273 + $0x58] sm:$0xff]
      %v291 = vld [vmem:[%s273 + $0x60] sm:$0xff]
      %v292 = vld [vmem:[%s273 + $0x68] sm:$0xff]
      %v293 = vld [vmem:[%s273 + $0x70] sm:$0xff]
      %v294 = vld [vmem:[%s273 + $0x78] sm:$0xff]
      %v295 = vld [vmem:[%s1] sm:$0xff]
      %v296 = vld [vmem:[%s1 + $0x8] sm:$0xff]
      %v297 = vld [vmem:[%s1 + $0x10] sm:$0xff]
      %v298 = vld [vmem:[%s1 + $0x18] sm:$0xff]
      %v299 = vld [vmem:[%s1 + $0x20] sm:$0xff]
      %v300 = vld [vmem:[%s1 + $0x28] sm:$0xff]
      %v301 = vld [vmem:[%s1 + $0x30] sm:$0xff]
      %v302 = vld [vmem:[%s1 + $0x38] sm:$0xff]
      %v303 = vld [vmem:[%s2] sm:$0xff]
      %v304 = vld [vmem:[%s2 + $0x8] sm:$0xff]
      %v305 = vld [vmem:[%s2 + $0x10] sm:$0xff]
      %v306 = vld [vmem:[%s2 + $0x18] sm:$0xff]
      %v307 = vld [vmem:[%s2 + $0x20] sm:$0xff]
      %v308 = vld [vmem:[%s2 + $0x28] sm:$0xff]
      %v309 = vld [vmem:[%s2 + $0x30] sm:$0xff]
      %v310 = vld [vmem:[%s2 + $0x38] sm:$0xff]
      %312 = vset.pattern.permute.xlu0 0
      %313 = vperm.xlu0 %312, %v303
      %v314 = vpop.permute.xlu0 %313
      %317 = vset.pattern.permute.xlu0 0
      %318 = vperm.xlu0 %317, %v304
      %v319 = vpop.permute.xlu0 %318
      %322 = vset.pattern.permute.xlu0 0
      %323 = vperm.xlu0 %322, %v305
      %v324 = vpop.permute.xlu0 %323
      %327 = vset.pattern.permute.xlu0 0
      %328 = vperm.xlu0 %327, %v306
      %v329 = vpop.permute.xlu0 %328
      %332 = vset.pattern.permute.xlu0 0
      %333 = vperm.xlu0 %332, %v307
      %v334 = vpop.permute.xlu0 %333
      %337 = vset.pattern.permute.xlu0 0
      %338 = vperm.xlu0 %337, %v308
      %v339 = vpop.permute.xlu0 %338
      %342 = vset.pattern.permute.xlu0 0
      %343 = vperm.xlu0 %342, %v309
      %v344 = vpop.permute.xlu0 %343
      %347 = vset.pattern.permute.xlu0 0
      %348 = vperm.xlu0 %347, %v310
      %v349 = vpop.permute.xlu0 %348
      %vm351 = vcmask 130048
      %v353 = vsel %vm351, %v295, 0
      %v356 = vsel %vm351, %v296, 0
      %v359 = vsel %vm351, %v297, 0
      %v362 = vsel %vm351, %v298, 0
      %v365 = vsel %vm351, %v299, 0
      %v368 = vsel %vm351, %v300, 0
      %v371 = vsel %vm351, %v301, 0
      %v374 = vsel %vm351, %v302, 0
      %v377 = vsel %vm351, %v279, 0
      %v380 = vsel %vm351, %v280, 0
      %v383 = vsel %vm351, %v281, 0
      %v386 = vsel %vm351, %v282, 0
      %v389 = vsel %vm351, %v283, 0
      %v392 = vsel %vm351, %v284, 0
      %v395 = vsel %vm351, %v285, 0
      %v398 = vsel %vm351, %v286, 0
      %v401 = vsel %vm351, %v287, 0
      %v404 = vsel %vm351, %v288, 0
      %v407 = vsel %vm351, %v289, 0
      %v410 = vsel %vm351, %v290, 0
      %v413 = vsel %vm351, %v291, 0
      %v416 = vsel %vm351, %v292, 0
      %v419 = vsel %vm351, %v293, 0
      %v422 = vsel %vm351, %v294, 0
      %424 = vmatprep.subr.mxu0 0.0
      %425 = vmatpush1.xpose.msra.mxu0 %v377
      %426 = vmatprep.subr.mxu0 0.0
      %427 = vmatpush1.xpose.msra.mxu0 %v380
      %428 = vmatprep.subr.mxu0 0.0
      %429 = vmatpush1.xpose.msra.mxu0 %v383
      %430 = vmatprep.subr.mxu0 0.0
      %431 = vmatpush1.xpose.msra.mxu0 %v386
      %432 = vmatprep.subr.mxu0 0.0
      %433 = vmatpush1.xpose.msra.mxu0 %v389
      %434 = vmatprep.subr.mxu0 0.0
      %435 = vmatpush1.xpose.msra.mxu0 %v392
      %436 = vmatprep.subr.mxu0 0.0
      %437 = vmatpush1.xpose.msra.mxu0 %v395
      %438 = vmatprep.subr.mxu0 0.0
      %439 = vmatpush1.xpose.msra.mxu0 %v398
      %440 = vmatprep.subr.mxu0 0.0
      %441 = vmatpush1.xpose.msra.mxu0 %v401
      %442 = vmatprep.subr.mxu0 0.0
      %443 = vmatpush1.xpose.msra.mxu0 %v404
      %444 = vmatprep.subr.mxu0 0.0
      %445 = vmatpush1.xpose.msra.mxu0 %v407
      %446 = vmatprep.subr.mxu0 0.0
      %447 = vmatpush1.xpose.msra.mxu0 %v410
      %448 = vmatprep.subr.mxu0 0.0
      %449 = vmatpush1.xpose.msra.mxu0 %v413
      %450 = vmatprep.subr.mxu0 0.0
      %451 = vmatpush1.xpose.msra.mxu0 %v416
      %452 = vmatprep.subr.mxu0 0.0
      %453 = vmatpush1.xpose.msra.mxu0 %v419
      %454 = vmatprep.subr.mxu0 0.0
      %455 = vmatpush1.xpose.msra.mxu0 %v422
      %456 = vmatprep.subr.mxu0 0.0
      %457 = vmatpush1.xpose.msra.mxu0 0.0
      %458 = vmatprep.subr.mxu0 0.0
      %459 = vmatpush1.xpose.msra.mxu0 0.0
      %460 = vmatprep.subr.mxu0 0.0
      %461 = vmatpush1.xpose.msra.mxu0 0.0
      %462 = vmatprep.subr.mxu0 0.0
      %463 = vmatpush1.xpose.msra.mxu0 0.0
      %464 = vmatprep.subr.mxu0 0.0
      %465 = vmatpush1.xpose.msra.mxu0 0.0
      %466 = vmatprep.subr.mxu0 0.0
      %467 = vmatpush1.xpose.msra.mxu0 0.0
      %468 = vmatprep.subr.mxu0 0.0
      %469 = vmatpush1.xpose.msra.mxu0 0.0
      %470 = vmatprep.subr.mxu0 0.0
      %471 = vmatpush1.xpose.msra.mxu0 0.0
      %472 = vmatprep.subr.mxu0 0.0
      %473 = vmatpush1.xpose.msra.mxu0 0.0
      %474 = vmatprep.subr.mxu0 0.0
      %475 = vmatpush1.xpose.msra.mxu0 0.0
      %476 = vmatprep.subr.mxu0 0.0
      %477 = vmatpush1.xpose.msra.mxu0 0.0
      %478 = vmatprep.subr.mxu0 0.0
      %479 = vmatpush1.xpose.msra.mxu0 0.0
      %480 = vmatprep.subr.mxu0 0.0
      %481 = vmatpush1.xpose.msra.mxu0 0.0
      %482 = vmatprep.subr.mxu0 0.0
      %483 = vmatpush1.xpose.msra.mxu0 0.0
      %484 = vmatprep.subr.mxu0 0.0
      %485 = vmatpush1.xpose.msra.mxu0 0.0
      %486 = vmatprep.subr.mxu0 0.0
      %487 = vmatpush1.xpose.msra.mxu0 0.0
      %488 = vmatprep.mubr.f32.mxu0 0.0
      %489 = vmatmul.mubr.f32.gmra.mrb[0].mxu0 %v353
      %v490 = vpop.f32.mrb[0].mxu0
      %v491 = vadd.f32 %v314, %v490
      %v492 = vpop.f32.mrb[0].mxu0
      %493 = vmatprep.mubr.f32.mxu0 0.0
      %494 = vmatmul.mubr.f32.gmra.mrb[0].mxu0 %v356
      %v495 = vpop.f32.mrb[0].mxu0
      %v496 = vadd.f32 %v319, %v495
      %v497 = vpop.f32.mrb[0].mxu0
      %498 = vmatprep.mubr.f32.mxu0 0.0
      %499 = vmatmul.mubr.f32.gmra.mrb[0].mxu0 %v359
      %v500 = vpop.f32.mrb[0].mxu0
      %v501 = vadd.f32 %v324, %v500
      %v502 = vpop.f32.mrb[0].mxu0
      %503 = vmatprep.mubr.f32.mxu0 0.0
      %504 = vmatmul.mubr.f32.gmra.mrb[0].mxu0 %v362
      %v505 = vpop.f32.mrb[0].mxu0
      %v506 = vadd.f32 %v329, %v505
      %v507 = vpop.f32.mrb[0].mxu0
      %508 = vmatprep.mubr.f32.mxu0 0.0
      %509 = vmatmul.mubr.f32.gmra.mrb[0].mxu0 %v365
      %v510 = vpop.f32.mrb[0].mxu0
      %v511 = vadd.f32 %v334, %v510
      %v512 = vpop.f32.mrb[0].mxu0
      %513 = vmatprep.mubr.f32.mxu0 0.0
      %514 = vmatmul.mubr.f32.gmra.mrb[0].mxu0 %v368
      %v515 = vpop.f32.mrb[0].mxu0
      %v516 = vadd.f32 %v339, %v515
      %v517 = vpop.f32.mrb[0].mxu0
      %518 = vmatprep.mubr.f32.mxu0 0.0
      %519 = vmatmul.mubr.f32.gmra.mrb[0].mxu0 %v371
      %v520 = vpop.f32.mrb[0].mxu0
      %v521 = vadd.f32 %v344, %v520
      %v522 = vpop.f32.mrb[0].mxu0
      %523 = vmatprep.mubr.f32.mxu0 0.0
      %524 = vmatmul.mubr.f32.gmra.mrb[0].mxu0 %v374
      %v525 = vpop.f32.mrb[0].mxu0
      %v526 = vadd.f32 %v349, %v525
      %v527 = vpop.f32.mrb[0].mxu0
      %528 = vdwg.mxu0
      %v529 = vmax.f32 %v491, 0.0
      %v530 = vmax.f32 %v496, 0.0
      %v531 = vmax.f32 %v501, 0.0
      %v532 = vmax.f32 %v506, 0.0
      %v533 = vmax.f32 %v511, 0.0
      %v534 = vmax.f32 %v516, 0.0
      %v535 = vmax.f32 %v521, 0.0
      %v536 = vmax.f32 %v526, 0.0
      %v537 = vld [vmem:[%s3] sm:$0xff]
      %v538 = vld [vmem:[%s3 + $0x8] sm:$0xff]
      %v539 = vld [vmem:[%s3 + $0x10] sm:$0xff]
      %v540 = vld [vmem:[%s3 + $0x18] sm:$0xff]
      %v541 = vld [vmem:[%s3 + $0x20] sm:$0xff]
      %v542 = vld [vmem:[%s3 + $0x28] sm:$0xff]
      %v543 = vld [vmem:[%s3 + $0x30] sm:$0xff]
      %v544 = vld [vmem:[%s3 + $0x38] sm:$0xff]
      %v545 = vld [vmem:[%s4] sm:$0xff]
      %v546 = vld [vmem:[%s4 + $0x8] sm:$0xff]
      %v547 = vld [vmem:[%s4 + $0x10] sm:$0xff]
      %v548 = vld [vmem:[%s4 + $0x18] sm:$0xff]
      %v549 = vld [vmem:[%s4 + $0x20] sm:$0xff]
      %v550 = vld [vmem:[%s4 + $0x28] sm:$0xff]
      %v551 = vld [vmem:[%s4 + $0x30] sm:$0xff]
      %v552 = vld [vmem:[%s4 + $0x38] sm:$0xff]
      %554 = vset.pattern.permute.xlu0 0
      %555 = vperm.xlu0 %554, %v545
      %v556 = vpop.permute.xlu0 %555
      %559 = vset.pattern.permute.xlu0 0
      %560 = vperm.xlu0 %559, %v546
      %v561 = vpop.permute.xlu0 %560
      %564 = vset.pattern.permute.xlu0 0
      %565 = vperm.xlu0 %564, %v547
      %v566 = vpop.permute.xlu0 %565
      %569 = vset.pattern.permute.xlu0 0
      %570 = vperm.xlu0 %569, %v548
      %v571 = vpop.permute.xlu0 %570
      %574 = vset.pattern.permute.xlu0 0
      %575 = vperm.xlu0 %574, %v549
      %v576 = vpop.permute.xlu0 %575
      %579 = vset.pattern.permute.xlu0 0
      %580 = vperm.xlu0 %579, %v550
      %v581 = vpop.permute.xlu0 %580
      %584 = vset.pattern.permute.xlu0 0
      %585 = vperm.xlu0 %584, %v551
      %v586 = vpop.permute.xlu0 %585
      %589 = vset.pattern.permute.xlu0 0
      %590 = vperm.xlu0 %589, %v552
      %v591 = vpop.permute.xlu0 %590
      %vm593 = vcmask 523264
      %v595 = vsel %vm593, %v537, 0
      %v598 = vsel %vm593, %v538, 0
      %v601 = vsel %vm593, %v539, 0
      %v604 = vsel %vm593, %v540, 0
      %v607 = vsel %vm593, %v541, 0
      %v610 = vsel %vm593, %v542, 0
      %v613 = vsel %vm593, %v543, 0
      %v616 = vsel %vm593, %v544, 0
      %618 = vmatprep.subr.mxu0 0.0
      %619 = vmatpush1.msra.mxu0 %v529
      %620 = vmatprep.subr.mxu0 0.0
      %621 = vmatpush1.msra.mxu0 %v530
      %622 = vmatprep.subr.mxu0 0.0
      %623 = vmatpush1.msra.mxu0 %v531
      %624 = vmatprep.subr.mxu0 0.0
      %625 = vmatpush1.msra.mxu0 %v532
      %626 = vmatprep.subr.mxu0 0.0
      %627 = vmatpush1.msra.mxu0 %v533
      %628 = vmatprep.subr.mxu0 0.0
      %629 = vmatpush1.msra.mxu0 %v534
      %630 = vmatprep.subr.mxu0 0.0
      %631 = vmatpush1.msra.mxu0 %v535
      %632 = vmatprep.subr.mxu0 0.0
      %633 = vmatpush1.msra.mxu0 %v536
      %634 = vmatprep.subr.mxu0 0.0
      %635 = vmatpush1.msra.mxu0 0.0
      %636 = vmatprep.subr.mxu0 0.0
      %637 = vmatpush1.msra.mxu0 0.0
      %638 = vmatprep.subr.mxu0 0.0
      %639 = vmatpush1.msra.mxu0 0.0
      %640 = vmatprep.subr.mxu0 0.0
      %641 = vmatpush1.msra.mxu0 0.0
      %642 = vmatprep.subr.mxu0 0.0
      %643 = vmatpush1.msra.mxu0 0.0
      %644 = vmatprep.subr.mxu0 0.0
      %645 = vmatpush1.msra.mxu0 0.0
      %646 = vmatprep.subr.mxu0 0.0
      %647 = vmatpush1.msra.mxu0 0.0
      %648 = vmatprep.subr.mxu0 0.0
      %649 = vmatpush1.msra.mxu0 0.0
      %650 = vmatprep.subr.mxu0 0.0
      %651 = vmatpush1.msra.mxu0 0.0
      %652 = vmatprep.subr.mxu0 0.0
      %653 = vmatpush1.msra.mxu0 0.0
      %654 = vmatprep.subr.mxu0 0.0
      %655 = vmatpush1.msra.mxu0 0.0
      %656 = vmatprep.subr.mxu0 0.0
      %657 = vmatpush1.msra.mxu0 0.0
      %658 = vmatprep.subr.mxu0 0.0
      %659 = vmatpush1.msra.mxu0 0.0
      %660 = vmatprep.subr.mxu0 0.0
      %661 = vmatpush1.msra.mxu0 0.0
      %662 = vmatprep.subr.mxu0 0.0
      %663 = vmatpush1.msra.mxu0 0.0
      %664 = vmatprep.subr.mxu0 0.0
      %665 = vmatpush1.msra.mxu0 0.0
      %666 = vmatprep.subr.mxu0 0.0
      %667 = vmatpush1.msra.mxu0 0.0
      %668 = vmatprep.subr.mxu0 0.0
      %669 = vmatpush1.msra.mxu0 0.0
      %670 = vmatprep.subr.mxu0 0.0
      %671 = vmatpush1.msra.mxu0 0.0
      %672 = vmatprep.subr.mxu0 0.0
      %673 = vmatpush1.msra.mxu0 0.0
      %674 = vmatprep.subr.mxu0 0.0
      %675 = vmatpush1.msra.mxu0 0.0
      %676 = vmatprep.subr.mxu0 0.0
      %677 = vmatpush1.msra.mxu0 0.0
      %678 = vmatprep.subr.mxu0 0.0
      %679 = vmatpush1.msra.mxu0 0.0
      %680 = vmatprep.subr.mxu0 0.0
      %681 = vmatpush1.msra.mxu0 0.0
      %682 = vmatprep.mubr.f32.mxu0 0.0
      %683 = vmatmul.mubr.f32.gmra.mrb[0].mxu0 %v595
      %v684 = vpop.f32.mrb[0].mxu0
      %v685 = vadd.f32 %v556, %v684
      %v686 = vpop.f32.mrb[0].mxu0
      %687 = vmatprep.mubr.f32.mxu0 0.0
      %688 = vmatmul.mubr.f32.gmra.mrb[0].mxu0 %v598
      %v689 = vpop.f32.mrb[0].mxu0
      %v690 = vadd.f32 %v561, %v689
      %v691 = vpop.f32.mrb[0].mxu0
      %692 = vmatprep.mubr.f32.mxu0 0.0
      %693 = vmatmul.mubr.f32.gmra.mrb[0].mxu0 %v601
      %v694 = vpop.f32.mrb[0].mxu0
      %v695 = vadd.f32 %v566, %v694
      %v696 = vpop.f32.mrb[0].mxu0
      %697 = vmatprep.mubr.f32.mxu0 0.0
      %698 = vmatmul.mubr.f32.gmra.mrb[0].mxu0 %v604
      %v699 = vpop.f32.mrb[0].mxu0
      %v700 = vadd.f32 %v571, %v699
      %v701 = vpop.f32.mrb[0].mxu0
      %702 = vmatprep.mubr.f32.mxu0 0.0
      %703 = vmatmul.mubr.f32.gmra.mrb[0].mxu0 %v607
      %v704 = vpop.f32.mrb[0].mxu0
      %v705 = vadd.f32 %v576, %v704
      %v706 = vpop.f32.mrb[0].mxu0
      %707 = vmatprep.mubr.f32.mxu0 0.0
      %708 = vmatmul.mubr.f32.gmra.mrb[0].mxu0 %v610
      %v709 = vpop.f32.mrb[0].mxu0
      %v710 = vadd.f32 %v581, %v709
      %v711 = vpop.f32.mrb[0].mxu0
      %712 = vmatprep.mubr.f32.mxu0 0.0
      %713 = vmatmul.mubr.f32.gmra.mrb[0].mxu0 %v613
      %v714 = vpop.f32.mrb[0].mxu0
      %v715 = vadd.f32 %v586, %v714
      %v716 = vpop.f32.mrb[0].mxu0
      %717 = vmatprep.mubr.f32.mxu0 0.0
      %718 = vmatmul.mubr.f32.gmra.mrb[0].mxu0 %v616
      %v719 = vpop.f32.mrb[0].mxu0
      %v720 = vadd.f32 %v591, %v719
      %v721 = vpop.f32.mrb[0].mxu0
      %722 = vdwg.mxu0
      %v723 = vmax.f32 %v685, 0.0
      %v724 = vmax.f32 %v690, 0.0
      %v725 = vmax.f32 %v695, 0.0
      %v726 = vmax.f32 %v700, 0.0
      %v727 = vmax.f32 %v705, 0.0
      %v728 = vmax.f32 %v710, 0.0
      %v729 = vmax.f32 %v715, 0.0
      %v730 = vmax.f32 %v720, 0.0
      %v731 = vld [vmem:[%s5] sm:$0xff]
      %v732 = vld [vmem:[%s6] sm:$0xff]
      %734 = vset.pattern.permute.xlu0 0
      %735 = vperm.xlu0 %734, %v732
      %v736 = vpop.permute.xlu0 %735
      %v739 = vsel %vm593, %v731, 0
      %741 = vmatprep.subr.mxu0 0.0
      %742 = vmatpush1.msra.mxu0 %v723
      %743 = vmatprep.subr.mxu0 0.0
      %744 = vmatpush1.msra.mxu0 %v724
      %745 = vmatprep.subr.mxu0 0.0
      %746 = vmatpush1.msra.mxu0 %v725
      %747 = vmatprep.subr.mxu0 0.0
      %748 = vmatpush1.msra.mxu0 %v726
      %749 = vmatprep.subr.mxu0 0.0
      %750 = vmatpush1.msra.mxu0 %v727
      %751 = vmatprep.subr.mxu0 0.0
      %752 = vmatpush1.msra.mxu0 %v728
      %753 = vmatprep.subr.mxu0 0.0
      %754 = vmatpush1.msra.mxu0 %v729
      %755 = vmatprep.subr.mxu0 0.0
      %756 = vmatpush1.msra.mxu0 %v730
      %757 = vmatprep.subr.mxu0 0.0
      %758 = vmatpush1.msra.mxu0 0.0
      %759 = vmatprep.subr.mxu0 0.0
      %760 = vmatpush1.msra.mxu0 0.0
      %761 = vmatprep.subr.mxu0 0.0
      %762 = vmatpush1.msra.mxu0 0.0
      %763 = vmatprep.subr.mxu0 0.0
      %764 = vmatpush1.msra.mxu0 0.0
      %765 = vmatprep.subr.mxu0 0.0
      %766 = vmatpush1.msra.mxu0 0.0
      %767 = vmatprep.subr.mxu0 0.0
      %768 = vmatpush1.msra.mxu0 0.0
      %769 = vmatprep.subr.mxu0 0.0
      %770 = vmatpush1.msra.mxu0 0.0
      %771 = vmatprep.subr.mxu0 0.0
      %772 = vmatpush1.msra.mxu0 0.0
      %773 = vmatprep.subr.mxu0 0.0
      %774 = vmatpush1.msra.mxu0 0.0
      %775 = vmatprep.subr.mxu0 0.0
      %776 = vmatpush1.msra.mxu0 0.0
      %777 = vmatprep.subr.mxu0 0.0
      %778 = vmatpush1.msra.mxu0 0.0
      %779 = vmatprep.subr.mxu0 0.0
      %780 = vmatpush1.msra.mxu0 0.0
      %781 = vmatprep.subr.mxu0 0.0
      %782 = vmatpush1.msra.mxu0 0.0
      %783 = vmatprep.subr.mxu0 0.0
      %784 = vmatpush1.msra.mxu0 0.0
      %785 = vmatprep.subr.mxu0 0.0
      %786 = vmatpush1.msra.mxu0 0.0
      %787 = vmatprep.subr.mxu0 0.0
      %788 = vmatpush1.msra.mxu0 0.0
      %789 = vmatprep.subr.mxu0 0.0
      %790 = vmatpush1.msra.mxu0 0.0
      %791 = vmatprep.subr.mxu0 0.0
      %792 = vmatpush1.msra.mxu0 0.0
      %793 = vmatprep.subr.mxu0 0.0
      %794 = vmatpush1.msra.mxu0 0.0
      %795 = vmatprep.subr.mxu0 0.0
      %796 = vmatpush1.msra.mxu0 0.0
      %797 = vmatprep.subr.mxu0 0.0
      %798 = vmatpush1.msra.mxu0 0.0
      %799 = vmatprep.subr.mxu0 0.0
      %800 = vmatpush1.msra.mxu0 0.0
      %801 = vmatprep.subr.mxu0 0.0
      %802 = vmatpush1.msra.mxu0 0.0
      %803 = vmatprep.subr.mxu0 0.0
      %804 = vmatpush1.msra.mxu0 0.0
      %805 = vmatprep.mubr.f32.mxu0 0.0
      %806 = vmatmul.mubr.f32.gmra.mrb[0].mxu0 %v739
      %v807 = vpop.f32.mrb[0].mxu0
      %v808 = vadd.f32 %v736, %v807
      %v809 = vpop.f32.mrb[0].mxu0
      %810 = vdwg.mxu0
      %811 = vst [vmem:[%s278] sm:$0xff] %v808
      %p812 = scmp.lt.s32.totalorder %s18, 1
      %s813 = scalar_select %p812, %s18, 1
      %s814 = smul.addr %s813, 8
      %s815 = scalar_lea.vmem %s7, %s814
      // Predicated region
      $region49: #{mlp_forward.1} parent=47 // pred_check
        %p816 = pneg %p188
      $region50: #{mlp_forward.1} parent=47 // pred_check_branch
        %818 = sbr.rel (%p816) target = $region52
      $region51: #{mlp_forward.1} parent=47 // pred_region
        _
      $region52: #{mlp_forward.1} parent=47 // pred_fallthru
        _
    $region48: #{mlp_forward.1} parent=5 // pred_fallthru
      _
    %p819 = scmp.le.s32.totalorder 2, %s13
    // Predicated region
    $region53: #{mlp_forward.1} parent=5 // pred_check
      %p820 = pneg %p819
    $region54: #{mlp_forward.1} parent=5 // pred_check_branch
      %822 = sbr.rel (%p820) target = $region56
    $region55: #{mlp_forward.1} parent=5 // pred_region
      %s823 = ssub.s32 %s13, 2
      // Predicated region
      $region57: #{mlp_forward.1} parent=55 // pred_check
        %p824 = pneg %p194
      $region58: #{mlp_forward.1} parent=55 // pred_check_branch
        %826 = sbr.rel (%p824) target = $region60
      $region59: #{mlp_forward.1} parent=55 // pred_region
        %p827 = scmp.lt.s32.totalorder %s19, 1
        %s828 = scalar_select %p827, %s19, 1
        %s829 = smul.addr %s828, 8
        %s830 = scalar_lea.vmem %s7, %s829
      $region60: #{mlp_forward.1} parent=55 // pred_fallthru
        _
    $region56: #{mlp_forward.1} parent=5 // pred_fallthru
      _
  $region6: #{mlp_forward.1} parent=0 // loop_footer
    %s17 = sadd.s32 1, %s13
  $region7: #{mlp_forward.1} parent=0 // loop_footer_branch
    %12 = sbr.rel target = $region3
  $region8: #{mlp_forward.1} parent=0 // loop_exit
    _

</llo_original>
